<compile_context>
chip_gen: v6e
topology: v6e:2x2x1
jax: 0.10.0
libtpu: 0.0.40
codegen_flags: <defaults>
</compile_context>

<pallas_src>
import jax
import jax.numpy as jnp
from jax import lax
from jax.experimental import pallas as pl
from jax.experimental.pallas import tpu as pltpu


def _perm_gather_kernel(x_ref, perm_ref, o_ref, oh_ref):
    # x_ref:    (TM, n_cols)   input row tile (HBM-fetched once per row tile)
    # perm_ref: (1,  TN) int32 permutation entries for this output-column tile
    # o_ref:    (TM, TN)       output tile
    # oh_ref:   (n_cols, TN)   VMEM scratch: one-hot built in-kernel
    n_cols, tn = oh_ref.shape
    row_ids = lax.broadcasted_iota(jnp.int32, (n_cols, tn), 0)
    # onehot[k, c] = 1 iff perm[col_base + c] == k   (exact 0/1 in any float dtype)
    oh_ref[...] = (row_ids == perm_ref[...]).astype(oh_ref.dtype)
    o_ref[...] = lax.dot_general(
        x_ref[...], oh_ref[...],
        dimension_numbers=(((1,), (0,)), ((), ())),   # plain matmul: x @ onehot_T
        preferred_element_type=jnp.float32,
    ).astype(o_ref.dtype)


def _vmem_capacity_bytes():
    try:
        cap = getattr(pltpu.get_tpu_info(), "vmem_capacity_bytes", None)
        if cap:
            return int(cap)
    except Exception:
        pass
    return 64 << 20  # conservative fallback (v7x per-core VMEM)


def _vmem_bytes(tm, tn, n_cols, itemsize):
    return (2 * tm * n_cols * itemsize   # x row tile, double buffered
            + 2 * tn * 4                 # permutation tile, double buffered
            + 2 * tm * tn * itemsize     # output tile, double buffered
            + n_cols * tn * itemsize)    # in-kernel one-hot scratch (single)


def _choose_tiles(rows, n_cols, itemsize, sub, budget):
    # Row tile: multiple of the sublane pack, or full extent for tiny batches
    # (full-extent blocks are always legal; padding the batch would add a full
    # HBM copy for a negligible MXU-utilization gain at these sizes).
    tm = rows if rows <= sub else max(sub, min(512, (rows // sub) * sub))
    # Output-column tile: multiple of 128 (unmasked lane-dense stores), or the
    # full extent when the array is narrower than one lane group.
    tn = n_cols if n_cols <= 128 else max(128, min(1024, (n_cols // 128) * 128))

    # Shrink the dominant contributor until the working set fits the budget.
    while _vmem_bytes(tm, tn, n_cols, itemsize) > budget:
        x_bytes = 2 * tm * n_cols * itemsize
        col_bytes = (n_cols + 2 * tm) * tn * itemsize
        if x_bytes >= col_bytes and tm > sub:
            tm = max(sub, ((tm // 2) // sub) * sub)
        elif tn > 128:
            tn = max(128, ((tn // 2) // 128) * 128)
        elif tm > sub:
            tm = max(sub, ((tm // 2) // sub) * sub)
        else:
            break
    return tm, tn


def fixed_permutation(x, permutation):
    """output = x[:, permutation] via a Pallas TPU kernel.

    x: (batch, size) or (batch, size, 2); permutation: (size,) ints.
    Floating-point dtypes only (MXU one-hot gather is exact for finite floats).
    """
    if not jnp.issubdtype(x.dtype, jnp.floating):
        # TODO(synk): integer inputs need a non-MXU gather path (DMA gather).
        raise NotImplementedError("fixed_permutation: floating dtypes only")

    perm = permutation.astype(jnp.int32)
    is_complex = (x.ndim == 3)
    if is_complex:
        b, n, c = x.shape
        x2 = x.reshape(b, n * c)  # free row-major reshape, no HBM transpose
        perm_cols = (c * perm[:, None]
                     + jnp.arange(c, dtype=jnp.int32)[None, :]).reshape(n * c)
    else:
        b, n = x.shape
        x2 = x
        perm_cols = perm

    rows, n_cols = x2.shape
    perm2d = perm_cols.reshape(1, n_cols)

    itemsize = jnp.dtype(x2.dtype).itemsize
    sub = {1: 32, 2: 16, 4: 8}.get(itemsize, 8)   # sublane pack per dtype width

    cap = _vmem_capacity_bytes()
    budget = int(cap * 0.8)                        # headroom for Mosaic internals
    tm, tn = _choose_tiles(rows, n_cols, itemsize, sub, budget)
    grid = (pl.cdiv(rows, tm), pl.cdiv(n_cols, tn))   # rows outer, cols inner

    needed = _vmem_bytes(tm, tn, n_cols, itemsize)
    vmem_limit = int(min(int(cap * 0.9), max(needed + (4 << 20), 16 << 20)))

    # Real DMA traffic: x read once, output written once, permutation re-read
    # once per row tile (int32, negligible).
    cost = pl.CostEstimate(
        flops=2 * rows * n_cols * n_cols,
        transcendentals=0,
        bytes_accessed=2 * rows * n_cols * itemsize + 4 * n_cols * grid[0],
    )

    out = pl.pallas_call(
        _perm_gather_kernel,
        out_shape=jax.ShapeDtypeStruct((rows, n_cols), x2.dtype),
        grid=grid,
        in_specs=[
            # Row tile: block index constant across the inner (column) axis, so
            # it is DMA'd from HBM once per row tile and stays VMEM-resident.
            pl.BlockSpec((tm, n_cols), lambda i, j: (i, 0)),
            # Permutation entries for the current output-column tile.
            pl.BlockSpec((1, tn), lambda i, j: (0, j)),
        ],
        out_specs=pl.BlockSpec((tm, tn), lambda i, j: (i, j)),
        scratch_shapes=[pltpu.VMEM((n_cols, tn), x2.dtype)],
        compiler_params=pltpu.CompilerParams(
            dimension_semantics=("parallel", "parallel"),
            vmem_limit_bytes=vmem_limit,
        ),
        cost_estimate=cost,
    )(x2, perm2d)

    if is_complex:
        out = out.reshape(b, n, c)
    return out


if __name__ == "__main__":
    key = jax.random.PRNGKey(0)
    k_perm, k_x, k_xc, k_perm2, k_x2 = jax.random.split(key, 5)

    batch, size = 2, 16
    permutation = jax.random.permutation(k_perm, size).astype(jnp.int32)

    # real case: (batch, size)
    x = jax.random.normal(k_x, (batch, size), dtype=jnp.float32)
    out = jax.block_until_ready(fixed_permutation(x, permutation))
    ref = x[:, permutation]
    assert out.shape == ref.shape and out.dtype == ref.dtype
    assert jnp.allclose(out, ref), "real-case mismatch"

    # complex case: (batch, size, 2)
    xc = jax.random.normal(k_xc, (batch, size, 2), dtype=jnp.float32)
    outc = jax.block_until_ready(fixed_permutation(xc, permutation))
    refc = xc[:, permutation]
    assert outc.shape == refc.shape and outc.dtype == refc.dtype
    assert jnp.allclose(outc, refc), "complex-case mismatch"

    # modest tile-spanning check (multi-column-tile grid, bf16, ragged edge)
    b2, s2 = 32, 1536
    perm2 = jax.random.permutation(k_perm2, s2).astype(jnp.int32)
    x2 = jax.random.normal(k_x2, (b2, s2), dtype=jnp.bfloat16)
    out2 = jax.block_until_ready(fixed_permutation(x2, perm2))
    ref2 = x2[:, perm2]
    assert out2.shape == ref2.shape and out2.dtype == ref2.dtype
    assert jnp.allclose(out2.astype(jnp.float32), ref2.astype(jnp.float32)), \
        "multi-tile bf16 mismatch"

    print("KERNEL_OK")
</pallas_src>

<mosaic_0001>
module attributes {stable_mosaic.version = 11 : i64} {
  func.func @_perm_gather_kernel(%arg0: i32, %arg1: i32, %arg2: memref<2x16xf32, #tpu.memory_space<vmem>>, %arg3: memref<1x16xi32, #tpu.memory_space<vmem>>, %arg4: memref<2x16xf32, #tpu.memory_space<vmem>>, %arg5: memref<16x16xf32, #tpu.memory_space<vmem>>) attributes {dimension_semantics = [#tpu.dimension_semantics<parallel>, #tpu.dimension_semantics<parallel>], iteration_bounds = array<i64: 1, 1>, scalar_prefetch = 0 : i64, scratch_operands = 1 : i64, tpu.core_type = #tpu.core_type<tc>, window_params = [{transform_indices = @transform_0, window_bounds = array<i64: 2, 16>}, {transform_indices = @transform_1, window_bounds = array<i64: 1, 16>}, {transform_indices = @transform_2, window_bounds = array<i64: 2, 16>}]} {
    %0 = tpu.iota {dimensions = array<i32: 0>} : vector<16x16xi32>
    %c0 = arith.constant 0 : index
    %c0_0 = arith.constant 0 : index
    %1 = vector.load %arg3[%c0, %c0_0] : memref<1x16xi32, #tpu.memory_space<vmem>>, vector<1x16xi32>
    %2 = vector.broadcast %1 : vector<1x16xi32> to vector<16x16xi32>
    %3 = arith.cmpi eq, %0, %2 : vector<16x16xi32>
    %4 = arith.extui %3 : vector<16x16xi1> to vector<16x16xi32>
    %5 = arith.sitofp %4 : vector<16x16xi32> to vector<16x16xf32>
    %c0_1 = arith.constant 0 : index
    %c0_2 = arith.constant 0 : index
    %6 = vector.load %arg5[%c0_1, %c0_2] : memref<16x16xf32, #tpu.memory_space<vmem>>, vector<16x16xf32>
    tpu.vector_store %arg5[%c0_1, %c0_2], %5 {strides = array<i32>} : memref<16x16xf32, #tpu.memory_space<vmem>>, vector<16x16xf32>,
    %c0_3 = arith.constant 0 : index
    %c0_4 = arith.constant 0 : index
    %7 = vector.load %arg2[%c0_3, %c0_4] : memref<2x16xf32, #tpu.memory_space<vmem>>, vector<2x16xf32>
    %c0_5 = arith.constant 0 : index
    %c0_6 = arith.constant 0 : index
    %8 = vector.load %arg5[%c0_5, %c0_6] : memref<16x16xf32, #tpu.memory_space<vmem>>, vector<16x16xf32>
    %cst = arith.constant dense<0.000000e+00> : vector<2x16xf32>
    %9 = tpu.matmul %7, %8, %cst {dimension_numbers = #tpu.dot_dimension_numbers<[1], [0], [0], [1], [0, 0, 1, 1], [], []>} : vector<2x16xf32>, vector<16x16xf32>, vector<2x16xf32> -> vector<2x16xf32>
    %c0_7 = arith.constant 0 : index
    %c0_8 = arith.constant 0 : index
    %10 = vector.load %arg4[%c0_7, %c0_8] : memref<2x16xf32, #tpu.memory_space<vmem>>, vector<2x16xf32>
    tpu.vector_store %arg4[%c0_7, %c0_8], %9 {strides = array<i32>} : memref<2x16xf32, #tpu.memory_space<vmem>>, vector<2x16xf32>,
    return
  }
  func.func @transform_0(%arg0: i32, %arg1: i32) -> (i32, i32) {
    %c0_i32 = arith.constant 0 : i32
    %c0_i32_0 = arith.constant 0 : i32
    return %arg0, %c0_i32 : i32, i32
  }
  func.func @transform_1(%arg0: i32, %arg1: i32) -> (i32, i32) {
    %c0_i32 = arith.constant 0 : i32
    %c0_i32_0 = arith.constant 0 : i32
    return %c0_i32, %arg1 : i32, i32
  }
  func.func @transform_2(%arg0: i32, %arg1: i32) -> (i32, i32) {
    %c0_i32 = arith.constant 0 : i32
    return %arg0, %arg1 : i32, i32
  }
}

</mosaic_0001>

<llo_original>
// kernel: tpu_custom_call.1
$region0: #{tpu_custom_call.1}
  #allocation0 [shape = 'u32[]', space=smem, size = 0x4, offset = 0x4, fixed_abs, tag = 'smem constant byte address 0x4 - core index']
  #allocation1 [shape = 'u32[144,128]{1,0:T(1,128)}', space=vmem, size = 0x12000, scoped, tag = 'internal scratch']
  #allocation2 [shape = 'f32[16,16]{1,0:T(8,128)}', space=vmem, size = 0x2000, scoped, tag = 'scratch operand']
  %s0 = inlined_call_operand.hbm [shape: f32[2,16], index: 0, kind: input, shape index: {}]
  %s1 = inlined_call_operand.vmem [shape: s32[1,16], index: 1, kind: input, shape index: {}]
  %s2 = inlined_call_operand.hbm [shape: f32[2,16], index: 2, kind: output, shape index: {}]
  %s3 = sld [smem:[#allocation0]]
  $region22: #{tpu_custom_call.1} parent=0
    _
  %s5 = ssub.s32 1, %s3
  %s6 = scalar_select 0, %s5, %s3
  $region1: #{tpu_custom_call.1} parent=0
    #allocation3 [shape = 'u8[1024]{0}', space=vmem, size = 0x400, scoped, tag = 'input window, operand 0, single buffered']
    #allocation4 [shape = 's32[1]{0}', space=sflag, size = 0x4, scoped, tag = 'scoped memory for tpu_custom_call.1']
    #allocation5 [shape = 's32[1]{0}', space=sflag, size = 0x4, scoped, tag = 'scoped memory for tpu_custom_call.1']
    #allocation6 [shape = 'u8[1024]{0}', space=vmem, size = 0x400, scoped, tag = 'output window, operand 0, single buffered']
    %7 = vsyncpa [#allocation4], 0
    %8 = vsyncpa [#allocation5], 0
    // Predicated region
    $region2: #{tpu_custom_call.1} parent=1 // pred_check
      _
    $region3: #{tpu_custom_call.1} parent=1 // pred_check_branch
      %10 = sbr.rel (0) target = $region5
    $region4: #{tpu_custom_call.1} parent=1 // pred_region
      %s12 = ssub.s32 32, 32
      %13 = vsyncadd [#allocation4], %s12
      %s15 = sshll.u32 [#allocation3], 4
      %s16 = int_to_ptr.vmem [resolvable:$true] %s15
      %18 = dma.hbm_to_vmem [thread:$0]  %s0, 32, %s16, [#allocation4]
    $region5: #{tpu_custom_call.1} parent=1 // pred_fallthru
      _
    // Predicated region
    $region6: #{tpu_custom_call.1} parent=1 // pred_check
      _
    $region7: #{tpu_custom_call.1} parent=1 // pred_check_branch
      %20 = sbr.rel (0) target = $region9
    $region8: #{tpu_custom_call.1} parent=1 // pred_region
      _
    $region9: #{tpu_custom_call.1} parent=1 // pred_fallthru
      _
    // Predicated region
    $region10: #{tpu_custom_call.1} parent=1 // pred_check
      _
    $region11: #{tpu_custom_call.1} parent=1 // pred_check_branch
      %22 = sbr.rel (0) target = $region13
    $region12: #{tpu_custom_call.1} parent=1 // pred_region
      %23 = dma.done [#allocation4], 32
    $region13: #{tpu_custom_call.1} parent=1 // pred_fallthru
      _
    %v24 = vlaneseq
    %v25 = vshrl.u32 %v24, 7
    %v26 = vadd.s32 %v25, 8
    %v27 = vld [vmem:[%s1] sm:$0x1]
    %v28 = vlaneseq
    %v29 = vshrl.u32 %v28, 7
    %v30 = vsub.s32 0, %v29
    %v31 = vrot.slane %v27, %v30
    %vm32 = vcmp.eq.s32.totalorder %v25, %v31
    %vm33 = vcmp.eq.s32.totalorder %v26, %v31
    %v34 = vsel %vm32, 1, 0
    %v35 = vsel %vm33, 1, 0
    %v36 = vcvt.s32.f32 %v34
    %v37 = vcvt.s32.f32 %v35
    %vm38 = vcmask 130048
    %39 = vst.msk [vmem:[#allocation2] sm:$0xff] %vm38, %v36
    %40 = vst.msk [vmem:[#allocation2 + $0x8] sm:$0xff] %vm38, %v37
    %v41 = vld [vmem:[#allocation3] sm:$0x3]
    %v42 = vld [vmem:[#allocation2] sm:$0xff]
    %v43 = vld [vmem:[#allocation2 + $0x8] sm:$0xff]
    %v45 = vsel %vm38, %v41, 0
    %47 = vmatprep.subr.mxu0 0.0
    %48 = vmatpush1.msra.mxu0 0.0
    %49 = vmatprep.subr.mxu0 0.0
    %50 = vmatpush1.msra.mxu0 0.0
    %51 = vmatprep.subr.mxu0 0.0
    %52 = vmatpush1.msra.mxu0 0.0
    %53 = vmatprep.subr.mxu0 0.0
    %54 = vmatpush1.msra.mxu0 0.0
    %55 = vmatprep.subr.mxu0 0.0
    %56 = vmatpush1.msra.mxu0 0.0
    %57 = vmatprep.subr.mxu0 0.0
    %58 = vmatpush1.msra.mxu0 0.0
    %59 = vmatprep.subr.mxu0 0.0
    %60 = vmatpush1.msra.mxu0 0.0
    %61 = vmatprep.subr.mxu0 0.0
    %62 = vmatpush1.msra.mxu0 0.0
    %63 = vmatprep.subr.mxu0 0.0
    %64 = vmatpush1.msra.mxu0 0.0
    %65 = vmatprep.subr.mxu0 0.0
    %66 = vmatpush1.msra.mxu0 0.0
    %67 = vmatprep.subr.mxu0 0.0
    %68 = vmatpush1.msra.mxu0 0.0
    %69 = vmatprep.subr.mxu0 0.0
    %70 = vmatpush1.msra.mxu0 0.0
    %71 = vmatprep.subr.mxu0 0.0
    %72 = vmatpush1.msra.mxu0 0.0
    %73 = vmatprep.subr.mxu0 0.0
    %74 = vmatpush1.msra.mxu0 0.0
    %75 = vmatprep.subr.mxu0 0.0
    %76 = vmatpush1.msra.mxu0 %v43
    %77 = vmatprep.subr.mxu0 0.0
    %78 = vmatpush1.msra.mxu0 %v42
    %79 = vmatprep.subr.mxu0 0.0
    %80 = vmatpush2.msra.mxu0 0.0
    %81 = vmatprep.subr.mxu0 0.0
    %82 = vmatpush2.msra.mxu0 0.0
    %83 = vmatprep.subr.mxu0 0.0
    %84 = vmatpush2.msra.mxu0 0.0
    %85 = vmatprep.subr.mxu0 0.0
    %86 = vmatpush2.msra.mxu0 0.0
    %87 = vmatprep.subr.mxu0 0.0
    %88 = vmatpush2.msra.mxu0 0.0
    %89 = vmatprep.subr.mxu0 0.0
    %90 = vmatpush2.msra.mxu0 0.0
    %91 = vmatprep.subr.mxu0 0.0
    %92 = vmatpush2.msra.mxu0 0.0
    %93 = vmatprep.subr.mxu0 0.0
    %94 = vmatpush2.msra.mxu0 0.0
    %95 = vmatprep.subr.mxu0 0.0
    %96 = vmatpush2.msra.mxu0 0.0
    %97 = vmatprep.subr.mxu0 0.0
    %98 = vmatpush2.msra.mxu0 0.0
    %99 = vmatprep.subr.mxu0 0.0
    %100 = vmatpush2.msra.mxu0 0.0
    %101 = vmatprep.subr.mxu0 0.0
    %102 = vmatpush2.msra.mxu0 0.0
    %103 = vmatprep.subr.mxu0 0.0
    %104 = vmatpush2.msra.mxu0 0.0
    %105 = vmatprep.subr.mxu0 0.0
    %106 = vmatpush2.msra.mxu0 0.0
    %107 = vmatprep.subr.mxu0 0.0
    %108 = vmatpush2.msra.mxu0 0.0
    %109 = vmatprep.subr.mxu0 0.0
    %110 = vmatpush2.msra.mxu0 0.0
    %111 = vmatprep.mubr.f32.mxu0 0.0
    %112 = vmatmul.mubr.f32.gmra.mxu0 %v45
    %v113 = vpop.f32.mrf.mxu0
    %v114 = vadd.f32 0.0, %v113
    %v115 = vpop.f32.mrf.mxu0
    %116 = vdwg.mxu0
    %vm117 = vcmask 123904
    %118 = vst.msk [vmem:[#allocation6] sm:$0x3] %vm117, %v114
    // Predicated region
    $region14: #{tpu_custom_call.1} parent=1 // pred_check
      _
    $region15: #{tpu_custom_call.1} parent=1 // pred_check_branch
      %120 = sbr.rel (0) target = $region17
    $region16: #{tpu_custom_call.1} parent=1 // pred_region
      %s122 = ssub.s32 32, 32
      %123 = vsyncadd [#allocation5], %s122
      %s125 = sshll.u32 [#allocation6], 4
      %s126 = int_to_ptr.vmem [resolvable:$true] %s125
      %128 = dma.vmem_to_hbm [thread:$0]  %s126, 32, %s2, [#allocation5]
    $region17: #{tpu_custom_call.1} parent=1 // pred_fallthru
      _
    // Predicated region
    $region18: #{tpu_custom_call.1} parent=1 // pred_check
      _
    $region19: #{tpu_custom_call.1} parent=1 // pred_check_branch
      %130 = sbr.rel (0) target = $region21
    $region20: #{tpu_custom_call.1} parent=1 // pred_region
      %131 = dma.done [#allocation5], 32
    $region21: #{tpu_custom_call.1} parent=1 // pred_fallthru
      _
    %132 = vsyncpa [#allocation4], 1
    %133 = vsyncpa [#allocation5], 1

</llo_original>
